<compile_context>
chip_gen: v7x
topology: tpu7x:2x2x1
jax: 0.10.0
libtpu: 0.0.40
codegen_flags: <defaults>
</compile_context>

<pallas_src>
import jax
import jax.numpy as jnp
from jax.experimental import pallas as pl
from jax.experimental.pallas import tpu as pltpu

_LANES = 128
_SUBLANES = 8
_MIN_GRID_STEPS = 8           # >= ~4 steps per TensorCore on v7x
_MIN_BLOCK_PHYS = 1 << 20     # stop shrinking tiles below ~1 MiB of VMEM


def _round_up(x: int, m: int) -> int:
    return (x + m - 1) // m * m


def _vmem_budgets():
    """Return (per-buffer block budget, vmem_limit_bytes) per TPU generation."""
    vmem_cap = 128 * 1024 * 1024
    try:
        info = pltpu.get_tpu_info()
        vmem_cap = int(getattr(info, "vmem_capacity_bytes", vmem_cap))
    except Exception:
        pass
    if vmem_cap <= 80 * 1024 * 1024:               # v7x-class: 64 MiB per core
        return 6 * 1024 * 1024, 40 * 1024 * 1024
    return 12 * 1024 * 1024, 80 * 1024 * 1024      # v5e / v6e: 128 MiB


def _nchw_phys(C, in_isz, out_isz):
    """Physical VMEM bytes of one (input + output) buffer set, NCHW blocks."""
    pc = _round_up(max(C, 1), _SUBLANES)           # C is the sublane dim -> pad to 8

    def phys(tb, thw):
        return tb * pc * thw * in_isz + _round_up(tb, _SUBLANES) * thw * out_isz

    return phys


def _nhwc_phys(C, in_isz, out_isz):
    """Physical VMEM bytes of one (input + output) buffer set, NHWC blocks."""
    lc = _round_up(max(C, 1), _LANES)              # C is the lane dim -> pad to 128

    def phys(tb, tr):
        return (tb * _round_up(tr, _SUBLANES) * lc * in_isz
                + _round_up(tb, _SUBLANES) * tr * out_isz)

    return phys


def _choose_tiles(B, HW, phys, block_budget):
    """Pick (tb, thw). thw: multiple of 128 (or == HW when HW < 128) and <= HW.
    tb: full batch when B <= 8, else a multiple of 8 (layout-legal output block)."""
    tb = B if B <= _SUBLANES else _SUBLANES

    # Spatial tile: multiple of 128 and <= HW so every block is lane-dense.
    hw_cap = HW if HW < _LANES else (HW // _LANES) * _LANES
    thw = min(hw_cap, max(1, block_budget // phys(tb, _LANES)) * _LANES)
    thw_floor = min(hw_cap, 4 * _LANES)            # >= 2 KiB DMA strips (v5e)
    if thw < thw_floor and phys(tb, thw_floor) <= block_budget:
        thw = thw_floor

    def steps(tb_, thw_):
        return pl.cdiv(B, tb_) * pl.cdiv(HW, thw_)

    # Grow the batch tile (multiples of 8) once the whole image fits in one
    # spatial tile, while the budget and the step count allow it.
    if thw >= hw_cap:
        while (tb + _SUBLANES <= B
               and phys(tb + _SUBLANES, thw) <= block_budget
               and steps(tb + _SUBLANES, thw) >= _MIN_GRID_STEPS):
            tb += _SUBLANES

    # If the grid collapsed to too few steps, shrink the spatial tile -- but
    # not below the DMA-strip floor and not below ~1 MiB blocks, so the
    # ~0.35 us per-step overhead stays amortized.
    while (steps(tb, thw) < _MIN_GRID_STEPS
           and thw > thw_floor
           and phys(tb, thw) > _MIN_BLOCK_PHYS):
        thw = max(thw_floor, _round_up(thw // 2, _LANES))

    return tb, thw


def _nchw_kernel(x_ref, w_ref, b_ref, o_ref):
    # x: (tb, C, thw) VMEM   w: (1, C, 1) VMEM   b: (1,) SMEM   o: (tb, thw) VMEM
    x = x_ref[...].astype(jnp.float32)
    w = w_ref[...].astype(jnp.float32)
    y = jnp.sum(x * w, axis=1) + b_ref[0]          # sublane (XLU) reduce over C
    o_ref[...] = jax.nn.sigmoid(y).astype(o_ref.dtype)


def _nhwc_kernel(x_ref, w_ref, b_ref, o_ref):
    # x: (tb, thw, C) VMEM   w: (1, 1, C) VMEM   b: (1,) SMEM   o: (tb, thw) VMEM
    x = x_ref[...].astype(jnp.float32)
    w = w_ref[...].astype(jnp.float32)
    y = jnp.sum(x * w, axis=-1) + b_ref[0]         # lane (XLU) reduce over C
    o_ref[...] = jax.nn.sigmoid(y).astype(o_ref.dtype)


def linear_probing_forward(x, weight, bias, data_format="auto"):
    """Forward pass of LinearProbingNet: 1x1 Conv2d(C -> 1) + Sigmoid.

    x      : (B, C, H, W) NCHW or (B, H, W, C) NHWC
    weight : (1, C, 1, 1) Conv2d weight
    bias   : (1,)         Conv2d bias
    returns: (B, 1, H, W), dtype of x
    """
    C = weight.shape[1]
    if data_format == "auto":
        # Mirrors the module: `if x.shape[1] != in_channels: permute(0,3,1,2)`.
        # Ambiguous when a true NCHW input has H == C -- pass data_format
        # explicitly ("NCHW"/"NHWC") in that case.
        if x.shape[1] == C:
            data_format = "NCHW"
        elif x.shape[-1] == C:
            data_format = "NHWC"
        else:
            raise ValueError(
                f"cannot infer layout for input shape {x.shape} with C={C}")

    block_budget, vmem_limit = _vmem_budgets()
    out_dtype = x.dtype
    in_isz = jnp.dtype(x.dtype).itemsize
    out_isz = jnp.dtype(out_dtype).itemsize
    b1d = bias.reshape(1).astype(jnp.float32)

    if data_format == "NCHW":
        B, _, H, W = x.shape
        HW = H * W
        x_flat = x.reshape(B, C, HW)               # free (contiguous) reshape
        w3d = weight.reshape(1, C, 1).astype(jnp.float32)
        tb, thw = _choose_tiles(B, HW, _nchw_phys(C, in_isz, out_isz), block_budget)
        kernel = _nchw_kernel
        in_specs = [
            pl.BlockSpec((tb, C, thw), lambda i, j: (i, 0, j)),   # activations
            pl.BlockSpec((1, C, 1), lambda i, j: (0, 0, 0)),      # weight (constant block)
            pl.BlockSpec(memory_space=pltpu.MemorySpace.SMEM),    # bias scalar
        ]
    else:  # NHWC -- native kernel, no XLA transpose pass over the activations
        B, H, W, _ = x.shape
        HW = H * W
        x_flat = x.reshape(B, HW, C)               # free (contiguous) reshape
        w3d = weight.reshape(1, 1, C).astype(jnp.float32)
        tb, thw = _choose_tiles(B, HW, _nhwc_phys(C, in_isz, out_isz), block_budget)
        kernel = _nhwc_kernel
        in_specs = [
            pl.BlockSpec((tb, thw, C), lambda i, j: (i, j, 0)),
            pl.BlockSpec((1, 1, C), lambda i, j: (0, 0, 0)),
            pl.BlockSpec(memory_space=pltpu.MemorySpace.SMEM),
        ]
        # TODO(synk): for very small C the NHWC input block lane-pads C to 128
        # in VMEM and DMAs short strips; still avoids a full-array transpose
        # pass, but a packed/bitcast channel layout would be even better.

    grid = (pl.cdiv(B, tb), pl.cdiv(HW, thw))

    out_flat = pl.pallas_call(
        kernel,
        out_shape=jax.ShapeDtypeStruct((B, HW), out_dtype),
        grid=grid,
        in_specs=in_specs,
        out_specs=pl.BlockSpec((tb, thw), lambda i, j: (i, j)),
        compiler_params=pltpu.CompilerParams(
            dimension_semantics=("parallel", "parallel"),
            vmem_limit_bytes=vmem_limit,
        ),
    )(x_flat, w3d, b1d)

    return out_flat.reshape(B, 1, H, W)


if __name__ == "__main__":
    # Small deterministic setup consistent with the module's forward.
    B, C, H, W = 2, 4, 16, 16
    key = jax.random.PRNGKey(0)
    kx, kw, kb = jax.random.split(key, 3)

    x = jax.random.normal(kx, (B, C, H, W), dtype=jnp.float32)
    # Conv2d(C, 1, kernel_size=1) parameters (deterministic synthetic init).
    weight = jax.random.normal(kw, (1, C, 1, 1), dtype=jnp.float32) * 0.1
    bias = jax.random.normal(kb, (1,), dtype=jnp.float32) * 0.1

    fwd = jax.jit(linear_probing_forward, static_argnames=("data_format",))

    # Reference in plain JAX (same math: 1x1 conv + sigmoid).
    ref = jax.nn.sigmoid(
        jnp.einsum("bchw,c->bhw", x, weight.reshape(C)) + bias[0]
    )[:, None, :, :]

    # NCHW path (module's main branch).
    out = fwd(x, weight, bias)
    jax.block_until_ready(out)
    assert out.shape == (B, 1, H, W)
    assert jnp.allclose(out, ref, atol=1e-5, rtol=1e-5)

    # NHWC path (module's permute branch), handled natively without a transpose.
    x_nhwc = jnp.transpose(x, (0, 2, 3, 1))
    out_nhwc = fwd(x_nhwc, weight, bias)
    jax.block_until_ready(out_nhwc)
    assert out_nhwc.shape == (B, 1, H, W)
    assert jnp.allclose(out_nhwc, ref, atol=1e-5, rtol=1e-5)

    print("KERNEL_OK")
</pallas_src>

<mosaic_0001>
module attributes {stable_mosaic.version = 11 : i64} {
  func.func @_nchw_kernel(%arg0: i32, %arg1: i32, %arg2: memref<2x4x256xf32, #tpu.memory_space<vmem>>, %arg3: memref<1x4x1xf32, #tpu.memory_space<vmem>>, %arg4: memref<1xf32, #tpu.memory_space<smem>>, %arg5: memref<2x256xf32, #tpu.memory_space<vmem>>) attributes {dimension_semantics = [#tpu.dimension_semantics<parallel>, #tpu.dimension_semantics<parallel>], iteration_bounds = array<i64: 1, 1>, scalar_prefetch = 0 : i64, scratch_operands = 0 : i64, tpu.core_type = #tpu.core_type<tc>, window_params = [{transform_indices = @transform_0, window_bounds = array<i64: 2, 4, 256>}, {pipeline_mode = #tpu.pipeline_mode<synchronous>, transform_indices = @transform_1, window_bounds = array<i64: 1, 4, 1>}, {transform_indices = @transform_2, window_bounds = array<i64: 1>}, {transform_indices = @transform_3, window_bounds = array<i64: 2, 256>}]} {
    %c0 = arith.constant 0 : index
    %c0_0 = arith.constant 0 : index
    %c0_1 = arith.constant 0 : index
    %0 = vector.load %arg2[%c0, %c0_0, %c0_1] : memref<2x4x256xf32, #tpu.memory_space<vmem>>, vector<2x4x256xf32>
    %c0_2 = arith.constant 0 : index
    %c0_3 = arith.constant 0 : index
    %c0_4 = arith.constant 0 : index
    %1 = vector.load %arg3[%c0_2, %c0_3, %c0_4] : memref<1x4x1xf32, #tpu.memory_space<vmem>>, vector<1x4x1xf32>
    %2 = vector.broadcast %1 : vector<1x4x1xf32> to vector<2x4x256xf32>
    %3 = arith.mulf %0, %2 : vector<2x4x256xf32>
    %cst = arith.constant dense<0.000000e+00> : vector<2x256xf32>
    %4 = vector.multi_reduction <add>, %3, %cst [1] : vector<2x4x256xf32> to vector<2x256xf32>
    %c0_5 = arith.constant 0 : index
    %5 = memref.load %arg4[%c0_5] : memref<1xf32, #tpu.memory_space<smem>>
    %6 = vector.broadcast %5 : f32 to vector<2x256xf32>
    %7 = arith.addf %4, %6 : vector<2x256xf32>
    %8 = arith.negf %7 : vector<2x256xf32>
    %9 = math.exp %8 : vector<2x256xf32>
    %cst_6 = arith.constant 1.000000e+00 : f32
    %10 = vector.broadcast %cst_6 : f32 to vector<2x256xf32>
    %11 = arith.addf %10, %9 : vector<2x256xf32>
    %12 = arith.divf %10, %11 : vector<2x256xf32>
    %c0_7 = arith.constant 0 : index
    %c0_8 = arith.constant 0 : index
    %13 = vector.load %arg5[%c0_7, %c0_8] : memref<2x256xf32, #tpu.memory_space<vmem>>, vector<2x256xf32>
    tpu.vector_store %arg5[%c0_7, %c0_8], %12 {strides = array<i32>} : memref<2x256xf32, #tpu.memory_space<vmem>>, vector<2x256xf32>,
    return
  }
  func.func @transform_0(%arg0: i32, %arg1: i32) -> (i32, i32, i32) {
    %c0_i32 = arith.constant 0 : i32
    %c0_i32_0 = arith.constant 0 : i32
    return %arg0, %c0_i32, %arg1 : i32, i32, i32
  }
  func.func @transform_1(%arg0: i32, %arg1: i32) -> (i32, i32, i32) {
    %c0_i32 = arith.constant 0 : i32
    %c0_i32_0 = arith.constant 0 : i32
    %c0_i32_1 = arith.constant 0 : i32
    %c0_i32_2 = arith.constant 0 : i32
    return %c0_i32, %c0_i32_0, %c0_i32_1 : i32, i32, i32
  }
  func.func @transform_2(%arg0: i32, %arg1: i32) -> i32 {
    %c0_i32 = arith.constant 0 : i32
    %c0_i32_0 = arith.constant 0 : i32
    return %c0_i32 : i32
  }
  func.func @transform_3(%arg0: i32, %arg1: i32) -> (i32, i32) {
    %c0_i32 = arith.constant 0 : i32
    return %arg0, %arg1 : i32, i32
  }
}

</mosaic_0001>

<llo_original>
// kernel: linear_probing_forward.1
$region0: #{linear_probing_forward.1}
  #allocation0 [shape = 'u32[]', space=smem, size = 0x4, offset = 0x4, fixed_abs, tag = 'smem constant byte address 0x4 - core index']
  #allocation1 [shape = 'u32[144,128]{1,0:T(1,128)}', space=vmem, size = 0x12000, scoped, tag = 'internal scratch']
  #allocation2 [shape = 'f32[1]{0:T(128)S(6)}', space=smem, size = 0x200, scoped, tag = 'scoped memory for linear_probing_forward.1']
  %s0 = inlined_call_operand.hbm [shape: f32[2,4,256], index: 0, kind: input, shape index: {}]
  %s1 = inlined_call_operand.hbm [shape: f32[1,4,1], index: 1, kind: input, shape index: {}]
  %s2 = inlined_call_operand.<no memory space> [shape: f32[1], index: 2, kind: input, shape index: {}]
  %s3 = inlined_call_operand.hbm [shape: f32[2,256], index: 3, kind: output, shape index: {}]
  %s4 = sld [smem:[#allocation0]]
  $region30: #{linear_probing_forward.1} parent=0
    _
  %s6 = ssub.s32 1, %s4
  %s7 = scalar_select 0, %s6, %s4
  %8 = sst [smem:[#allocation2]] %s2
  $region1: #{linear_probing_forward.1} parent=0
    #allocation3 [shape = 'u8[8192]{0}', space=vmem, size = 0x2000, scoped, tag = 'input window, operand 0, single buffered']
    #allocation4 [shape = 's32[1]{0}', space=sflag, size = 0x4, scoped, tag = 'scoped memory for linear_probing_forward.1']
    #allocation5 [shape = 's32[1]{0}', space=sflag, size = 0x4, scoped, tag = 'scoped memory for linear_probing_forward.1']
    #allocation6 [shape = 'u8[2048]{0}', space=vmem, size = 0x800, scoped, tag = 'input window, operand 1, single buffered']
    #allocation7 [shape = 's32[1]{0}', space=sflag, size = 0x4, scoped, tag = 'scoped memory for linear_probing_forward.1']
    #allocation8 [shape = 'u8[2048]{0}', space=vmem, size = 0x800, scoped, tag = 'output window, operand 0, single buffered']
    %9 = vsyncpa [#allocation4], 0
    %10 = vsyncpa [#allocation7], 0
    %11 = vsyncpa [#allocation5], 0
    // Predicated region
    $region2: #{linear_probing_forward.1} parent=1 // pred_check
      _
    $region3: #{linear_probing_forward.1} parent=1 // pred_check_branch
      %13 = sbr.rel (0) target = $region5
    $region4: #{linear_probing_forward.1} parent=1 // pred_region
      %s15 = ssub.s32 256, 256
      %16 = vsyncadd [#allocation4], %s15
      %s17 = sshll.u32 [#allocation3], 4
      %s18 = int_to_ptr.vmem [resolvable:$true] %s17
      %23 = dma.hbm_to_vmem [thread:$0]  %s0, 256, %s18, [#allocation4], 128, 128, 8
    $region5: #{linear_probing_forward.1} parent=1 // pred_fallthru
      _
    // Predicated region
    $region6: #{linear_probing_forward.1} parent=1 // pred_check
      _
    $region7: #{linear_probing_forward.1} parent=1 // pred_check_branch
      %25 = sbr.rel (0) target = $region9
    $region8: #{linear_probing_forward.1} parent=1 // pred_region
      %s27 = ssub.s32 64, 64
      %28 = vsyncadd [#allocation7], %s27
      %s30 = sshll.u32 [#allocation6], 4
      %s31 = int_to_ptr.vmem [resolvable:$true] %s30
      %33 = dma.hbm_to_vmem [thread:$0]  %s1, 64, %s31, [#allocation7]
    $region9: #{linear_probing_forward.1} parent=1 // pred_fallthru
      _
    // Predicated region
    $region10: #{linear_probing_forward.1} parent=1 // pred_check
      _
    $region11: #{linear_probing_forward.1} parent=1 // pred_check_branch
      %35 = sbr.rel (0) target = $region13
    $region12: #{linear_probing_forward.1} parent=1 // pred_region
      _
    $region13: #{linear_probing_forward.1} parent=1 // pred_fallthru
      _
    // Predicated region
    $region14: #{linear_probing_forward.1} parent=1 // pred_check
      _
    $region15: #{linear_probing_forward.1} parent=1 // pred_check_branch
      %37 = sbr.rel (0) target = $region17
    $region16: #{linear_probing_forward.1} parent=1 // pred_region
      %38 = dma.done [#allocation4], 256
    $region17: #{linear_probing_forward.1} parent=1 // pred_fallthru
      _
    // Predicated region
    $region18: #{linear_probing_forward.1} parent=1 // pred_check
      _
    $region19: #{linear_probing_forward.1} parent=1 // pred_check_branch
      %40 = sbr.rel (0) target = $region21
    $region20: #{linear_probing_forward.1} parent=1 // pred_region
      %41 = dma.done [#allocation7], 64
    $region21: #{linear_probing_forward.1} parent=1 // pred_fallthru
      _
    %v42 = vld [vmem:[#allocation3] sm:$0xff]
    %v43 = vld [vmem:[#allocation3 + $0x8] sm:$0xff]
    %v44 = vld [vmem:[#allocation6] sm:$0xf]
    %46 = vset.pattern.permute.xlu0 0
    %47 = vperm.xlu0 %46, %v44
    %v48 = vpop.permute.xlu0 %47
    %v50 = vunpack.c.l.s4 839922192
    %v51 = vunpack.c.0.s8 %v50
    %v52 = vlaneseq
    %v53 = vshrl.u32 %v52, 7
    %v54 = vsub.s32 %v51, %v53
    %v55 = vrot.slane %v48, %v54
    %v57 = vmul.f32 %v42, %v55
    %v58 = vmul.f32 %v43, %v55
    %v61 = vcombine.high %v57, %v57
    %v62 = vcombine.high %v58, %v58
    %vm65 = vcmask 1043456
    %v66 = vsel %vm65, %v57, 0.0
    %v67 = vrot.slane %v66, 4
    %v68 = vadd.f32 %v66, %v67
    %v69 = vrot.slane %v68, 2
    %v70 = vadd.f32 %v68, %v69
    %v71 = vrot.slane %v70, 1
    %v72 = vadd.f32 %v70, %v71
    %v73 = vsel %vm65, %v61, 0.0
    %v74 = vrot.slane %v73, 4
    %v75 = vadd.f32 %v73, %v74
    %v76 = vrot.slane %v75, 2
    %v77 = vadd.f32 %v75, %v76
    %v78 = vrot.slane %v77, 1
    %v79 = vadd.f32 %v77, %v78
    %v80 = vsel %vm65, %v58, 0.0
    %v81 = vrot.slane %v80, 4
    %v82 = vadd.f32 %v80, %v81
    %v83 = vrot.slane %v82, 2
    %v84 = vadd.f32 %v82, %v83
    %v85 = vrot.slane %v84, 1
    %v86 = vadd.f32 %v84, %v85
    %v87 = vsel %vm65, %v62, 0.0
    %v88 = vrot.slane %v87, 4
    %v89 = vadd.f32 %v87, %v88
    %v90 = vrot.slane %v89, 2
    %v91 = vadd.f32 %v89, %v90
    %v92 = vrot.slane %v91, 1
    %v93 = vadd.f32 %v91, %v92
    %s94 = sld [smem:[#allocation2]]
    %v95 = vstv %s94
    %v96 = vadd.f32 %v72, %v95
    %v97 = vadd.f32 %v79, %v95
    %v98 = vadd.f32 %v86, %v95
    %v99 = vadd.f32 %v93, %v95
    %v100 = vxor.u32 %v96, 2147483648
    %v101 = vxor.u32 %v97, 2147483648
    %v102 = vxor.u32 %v98, 2147483648
    %v103 = vxor.u32 %v99, 2147483648
    %v104 = vmul.f32 %v100, 1.442695
    %v105 = vpow.pop %v104
    %v106 = vmul.f32 %v101, 1.442695
    %v107 = vpow.pop %v106
    %v108 = vmul.f32 %v102, 1.442695
    %v109 = vpow.pop %v108
    %v110 = vmul.f32 %v103, 1.442695
    %v111 = vpow.pop %v110
    %v112 = vadd.f32 %v105, 1.0
    %v113 = vadd.f32 %v107, 1.0
    %v114 = vadd.f32 %v109, 1.0
    %v115 = vadd.f32 %v111, 1.0
    %v116 = vrcp.pop %v112
    %v117 = vmul.f32 1.0, %v116
    %v118 = vrcp.pop %v113
    %v119 = vmul.f32 1.0, %v118
    %v120 = vrcp.pop %v114
    %v121 = vmul.f32 1.0, %v120
    %v122 = vrcp.pop %v115
    %v123 = vmul.f32 1.0, %v122
    %v128 = vcombine.low %v117, %v119
    %v130 = vunpack.c.l.s4 1983009808
    %v131 = vunpack.c.0.s8 %v130
    %v132 = vlaneseq
    %v133 = vshrl.u32 %v132, 7
    %v134 = vsub.s32 %v131, %v133
    %v135 = vrot.slane %v128, %v134
    %v136 = vcombine.low %v121, %v123
    %v138 = vunpack.c.l.s4 1983009808
    %v139 = vunpack.c.0.s8 %v138
    %v140 = vlaneseq
    %v141 = vshrl.u32 %v140, 7
    %v142 = vsub.s32 %v139, %v141
    %v143 = vrot.slane %v136, %v142
    %vm144 = vcmask 1044484
    %v145 = vsel %vm144, %v135, %v135
    %vm146 = vcmask 1046534
    %v147 = vsel %vm146, %v135, %v145
    %v148 = vrot.slane %v143, 7
    %vm149 = vcmask 1041409
    %v150 = vsel %vm149, %v148, %v147
    %vm151 = vcmask 1043459
    %v152 = vsel %vm151, %v148, %v150
    %vm153 = vcmask 1045509
    %v154 = vsel %vm153, %v148, %v152
    %vm155 = vcmask 1047559
    %v156 = vsel %vm155, %v148, %v154
    %158 = vst [vmem:[#allocation8] sm:$0xf] %v156
    // Predicated region
    $region22: #{linear_probing_forward.1} parent=1 // pred_check
      _
    $region23: #{linear_probing_forward.1} parent=1 // pred_check_branch
      %160 = sbr.rel (0) target = $region25
    $region24: #{linear_probing_forward.1} parent=1 // pred_region
      %s162 = ssub.s32 64, 64
      %163 = vsyncadd [#allocation5], %s162
      %s165 = sshll.u32 [#allocation8], 4
      %s166 = int_to_ptr.vmem [resolvable:$true] %s165
      %168 = dma.vmem_to_hbm [thread:$0]  %s166, 64, %s3, [#allocation5]
    $region25: #{linear_probing_forward.1} parent=1 // pred_fallthru
      _
    // Predicated region
    $region26: #{linear_probing_forward.1} parent=1 // pred_check
      _
    $region27: #{linear_probing_forward.1} parent=1 // pred_check_branch
      %170 = sbr.rel (0) target = $region29
    $region28: #{linear_probing_forward.1} parent=1 // pred_region
      %171 = dma.done [#allocation5], 64
    $region29: #{linear_probing_forward.1} parent=1 // pred_fallthru
      _
    %172 = vsyncpa [#allocation4], 1
    %173 = vsyncpa [#allocation7], 1
    %174 = vsyncpa [#allocation5], 1

</llo_original>
